<compile_context>
chip_gen: v7x
topology: tpu7x:2x2x1
jax: 0.10.0
libtpu: 0.0.40
codegen_flags: <defaults>
</compile_context>

<pallas_src>
import numpy as np
import jax
import jax.numpy as jnp
from jax.experimental import pallas as pl
from jax.experimental.pallas import tpu as pltpu

_LANE = 128


def build_uniform_P(class_size: int, noise: float) -> np.ndarray:
    """Uniform label-noise transition matrix (same as dgnnutils.build_uniform_P)."""
    P = np.full((class_size, class_size), noise / (class_size - 1), dtype=np.float32)
    np.fill_diagonal(P, 1.0 - noise)
    return P


def _round_up(x: int, m: int) -> int:
    return ((x + m - 1) // m) * m


def _padded_class_dim(C: int) -> int:
    """Smallest Cp >= C that divides 128 (power of two); multiple of 128 if C > 128."""
    if C > _LANE:
        return _round_up(C, _LANE)
    cp = 1
    while cp < C:
        cp *= 2
    return cp


def _stream_matmul_kernel(x_ref, p_ref, o_ref):
    """One streamed row tile: (TM, K) @ (K, K) on the MXU, f32 accumulate."""
    o_ref[...] = jnp.dot(
        x_ref[...], p_ref[...], preferred_element_type=jnp.float32
    ).astype(o_ref.dtype)


def noise_ada_prepare(B: jax.Array, compute_dtype):
    """One-time (per parameter update) prep.

    Returns (P_big, pack, Cp) where P_big = kron(I_pack, softmax(B)) padded to a
    lane-dense (K, K) block-diagonal mixing matrix, K = pack * Cp.
    Depends only on the parameter B -> cache it across batches in a training loop.
    """
    C = B.shape[0]
    Cp = _padded_class_dim(C)
    pack = max(_LANE // Cp, 1)

    P = jax.nn.softmax(B.astype(jnp.float32), axis=1)  # tiny (C, C); fused by XLA
    if Cp != C:
        P = jnp.pad(P, ((0, Cp - C), (0, Cp - C)))      # zero rows/cols keep padding inert
    if pack > 1:
        P_big = jnp.kron(jnp.eye(pack, dtype=jnp.float32), P)
    else:
        P_big = P
    return P_big.astype(compute_dtype), pack, Cp


def noise_ada_apply(pred: jax.Array, P_big: jax.Array, pack: int, Cp: int,
                    *, tile_rows: int = 2048) -> jax.Array:
    """pred: [N, C] -> [N, C] == pred @ softmax(B, dim=1), using cached P_big."""
    N, C = pred.shape
    K = Cp * pack
    assert P_big.shape == (K, K)
    out_dtype = pred.dtype
    P_big = P_big.astype(out_dtype)  # no-op if prepared with the same dtype

    # ---- lane densification (free reshape in the common C | 128, N % pack == 0 case)
    col_pad = Cp - C
    row_pad = (-N) % pack
    x = pred
    if col_pad or row_pad:
        x = jnp.pad(x, ((0, row_pad), (0, col_pad)))
    n_rows = N + row_pad
    m_rows = n_rows // pack
    x = x.reshape(m_rows, K)

    # ---- row tile: large enough to amortize the ~0.35us per-step overhead,
    # but keep >= 2 grid steps when possible so "parallel" feeds both v7x TCs.
    tm = max(8, min(tile_rows, _round_up(pl.cdiv(m_rows, 2), 8)))
    grid = (pl.cdiv(m_rows, tm),)

    in_bytes = x.dtype.itemsize
    out_bytes = jnp.dtype(out_dtype).itemsize

    out = pl.pallas_call(
        _stream_matmul_kernel,
        out_shape=jax.ShapeDtypeStruct((m_rows, K), out_dtype),
        grid=grid,
        in_specs=[
            pl.BlockSpec((tm, K), lambda i: (i, 0)),  # streamed pred row tiles
            pl.BlockSpec((K, K), lambda i: (0, 0)),   # P_big resident in VMEM
        ],
        out_specs=pl.BlockSpec((tm, K), lambda i: (i, 0)),
        compiler_params=pltpu.CompilerParams(
            dimension_semantics=("parallel",),
        ),
        cost_estimate=pl.CostEstimate(
            flops=2 * m_rows * K * K,
            transcendentals=0,
            bytes_accessed=m_rows * K * (in_bytes + out_bytes) + K * K * in_bytes,
        ),
    )(x, P_big)

    out = out.reshape(n_rows, Cp)
    if col_pad or row_pad:
        out = out[:N, :C]
    return out


def noise_ada_forward(pred: jax.Array, B: jax.Array, *, tile_rows: int = 2048) -> jax.Array:
    """Full NoiseAda forward.  In a training loop, hoist noise_ada_prepare out of
    the per-batch hot path (P_big only changes when the parameter B changes)."""
    P_big, pack, Cp = noise_ada_prepare(B, pred.dtype)
    return noise_ada_apply(pred, P_big, pack, Cp, tile_rows=tile_rows)


if __name__ == "__main__":
    class_size = 8
    noise = 0.2
    N = 10000  # enough rows to exercise a 2-step grid with a ragged last block

    # Deterministic parameter init (matches nn.Parameter(torch.log(P))).
    P_init = build_uniform_P(class_size, noise)
    B = jnp.asarray(np.log(P_init), dtype=jnp.float32)

    # Deterministic example input ("pred" of shape [N, C]).
    key = jax.random.PRNGKey(0)
    pred = jax.random.normal(key, (N, class_size), dtype=jnp.float32)

    # f32 path (module's native dtype).
    out = jax.block_until_ready(noise_ada_forward(pred, B))
    ref = pred @ jax.nn.softmax(B, axis=1)
    np.testing.assert_allclose(np.asarray(out), np.asarray(ref), rtol=1e-4, atol=1e-5)

    # bf16 path: matmul runs in the input dtype (halved HBM traffic), f32 accumulate.
    pred_bf16 = pred.astype(jnp.bfloat16)
    out_bf16 = jax.block_until_ready(noise_ada_forward(pred_bf16, B))
    ref_bf16 = pred_bf16.astype(jnp.float32) @ jax.nn.softmax(B, axis=1)
    np.testing.assert_allclose(
        np.asarray(out_bf16, dtype=np.float32), np.asarray(ref_bf16), rtol=2e-2, atol=2e-2
    )

    print("KERNEL_OK")
</pallas_src>

<mosaic_0001>
module attributes {stable_mosaic.version = 11 : i64} {
  func.func @_stream_matmul_kernel(%arg0: i32, %arg1: memref<320x128xf32, #tpu.memory_space<vmem>>, %arg2: memref<128x128xf32, #tpu.memory_space<vmem>>, %arg3: memref<320x128xf32, #tpu.memory_space<vmem>>) attributes {dimension_semantics = [#tpu.dimension_semantics<parallel>], iteration_bounds = array<i64: 2>, scalar_prefetch = 0 : i64, scratch_operands = 0 : i64, tpu.core_type = #tpu.core_type<tc>, window_params = [{transform_indices = @transform_0, window_bounds = array<i64: 320, 128>}, {pipeline_mode = #tpu.pipeline_mode<synchronous>, transform_indices = @transform_1, window_bounds = array<i64: 128, 128>}, {transform_indices = @transform_2, window_bounds = array<i64: 320, 128>}]} {
    %c0 = arith.constant 0 : index
    %c0_0 = arith.constant 0 : index
    %0 = vector.load %arg1[%c0, %c0_0] : memref<320x128xf32, #tpu.memory_space<vmem>>, vector<320x128xf32>
    %c0_1 = arith.constant 0 : index
    %c0_2 = arith.constant 0 : index
    %1 = vector.load %arg2[%c0_1, %c0_2] : memref<128x128xf32, #tpu.memory_space<vmem>>, vector<128x128xf32>
    %cst = arith.constant dense<0.000000e+00> : vector<320x128xf32>
    %2 = tpu.matmul %0, %1, %cst {dimension_numbers = #tpu.dot_dimension_numbers<[1], [0], [0], [1], [0, 0, 1, 1], [], []>} : vector<320x128xf32>, vector<128x128xf32>, vector<320x128xf32> -> vector<320x128xf32>
    %c0_3 = arith.constant 0 : index
    %c0_4 = arith.constant 0 : index
    %3 = vector.load %arg3[%c0_3, %c0_4] : memref<320x128xf32, #tpu.memory_space<vmem>>, vector<320x128xf32>
    tpu.vector_store %arg3[%c0_3, %c0_4], %2 {strides = array<i32>} : memref<320x128xf32, #tpu.memory_space<vmem>>, vector<320x128xf32>,
    return
  }
  func.func @transform_0(%arg0: i32) -> (i32, i32) {
    %c0_i32 = arith.constant 0 : i32
    %c0_i32_0 = arith.constant 0 : i32
    return %arg0, %c0_i32 : i32, i32
  }
  func.func @transform_1(%arg0: i32) -> (i32, i32) {
    %c0_i32 = arith.constant 0 : i32
    %c0_i32_0 = arith.constant 0 : i32
    %c0_i32_1 = arith.constant 0 : i32
    return %c0_i32, %c0_i32_0 : i32, i32
  }
  func.func @transform_2(%arg0: i32) -> (i32, i32) {
    %c0_i32 = arith.constant 0 : i32
    %c0_i32_0 = arith.constant 0 : i32
    return %arg0, %c0_i32 : i32, i32
  }
}

</mosaic_0001>

<llo_original>
// kernel: tpu_custom_call.1
$region0: #{tpu_custom_call.1}
  #allocation0 [shape = 'u32[]', space=smem, size = 0x4, offset = 0x4, fixed_abs, tag = 'smem constant byte address 0x4 - core index']
  #allocation1 [shape = 'u32[144,128]{1,0:T(1,128)}', space=vmem, size = 0x12000, scoped, tag = 'internal scratch']
  %s0 = inlined_call_operand.hbm [shape: f32[625,128], index: 0, kind: input, shape index: {}]
  %s1 = inlined_call_operand.hbm [shape: f32[128,128], index: 1, kind: input, shape index: {}]
  %s2 = inlined_call_operand.hbm [shape: f32[625,128], index: 2, kind: output, shape index: {}]
  %s3 = sld [smem:[#allocation0]]
  $region49: #{tpu_custom_call.1} parent=0
    _
  %s5 = ssub.s32 1, %s3
  %s6 = scalar_select 0, %s5, %s3
  $region1: #{tpu_custom_call.1} parent=0
    #allocation2 [shape = 'u8[327680]{0}', space=vmem, size = 0x50000, scoped, tag = 'input window, operand 0']
    #allocation3 [shape = 's32[2]{0}', space=sflag, size = 0x8, scoped, tag = 'scoped memory for tpu_custom_call.1']
    #allocation4 [shape = 's32[2]{0}', space=sflag, size = 0x8, scoped, tag = 'scoped memory for tpu_custom_call.1']
    #allocation5 [shape = 'u8[65536]{0}', space=vmem, size = 0x10000, scoped, tag = 'input window, operand 1, single buffered']
    #allocation6 [shape = 's32[1]{0}', space=sflag, size = 0x4, scoped, tag = 'scoped memory for tpu_custom_call.1']
    #allocation7 [shape = 'u8[327680]{0}', space=vmem, size = 0x50000, scoped, tag = 'output window, operand 0']
    %7 = vsyncpa [#allocation3], 0
    %s8 = scalar_lea.sflag [#allocation3], 1
    %9 = vsyncpa %s8, 0
    %10 = vsyncpa [#allocation6], 0
    %11 = vsyncpa [#allocation4], 0
    %s12 = scalar_lea.sflag [#allocation4], 1
    %13 = vsyncpa %s12, 0
    loop: start=0, step=1, limit=4
    $region2: #{tpu_custom_call.1} parent=1 // loop_pre_header
      _
    $region3: #{tpu_custom_call.1} parent=1 // loop_header
      %s15 = sphi 0, %s19
      %p16 = scmp.ge.s32.totalorder %s15, 4
      %s25 = sphi 0, %s27
      %s28 = sphi 0, %s25
      %s29 = sphi 0, %s28
      %s45 = sphi 0, %s29
      %s49 = sphi 0, %s49
      %s51 = sphi 0, %s49
      %s52 = sphi 0, %s51
      %s66 = sphi 0, %s52
      %s72 = sphi 0, %s74
      %s75 = sphi 0, %s72
      %s76 = sphi 0, %s75
      %s92 = sphi 0, %s76
    $region4: #{tpu_custom_call.1} parent=1 // loop_header_branch
      %18 = sbr.rel (%p16) target = $region8
    $region5: #{tpu_custom_call.1} parent=1 // loop_body
      %s20 = ssub.s32 %s15, 1
      %s21 = ssub.s32 %s15, 2
      %s22 = sadd.s32 %s15, 1
      %s23 = ssub.s32 %s15, %s22
      %p24 = scmp.eq.s32.totalorder %s23, 0
      %s26 = sadd.s32 %s25, 1
      %s27 = scalar_select %p24, %s25, %s26
      %p30 = pneg %p24
      %p31 = scmp.eq.s32.totalorder %s15, 1
      %p32 = por %p30, %p31
      %p33 = scmp.ne.s32.totalorder %s25, %s28
      %p34 = scmp.eq.s32.totalorder %s15, 0
      %p35 = por %p33, %p34
      %p36 = scmp.ne.s32.totalorder %s25, %s28
      %p37 = scmp.eq.s32.totalorder %s20, 1
      %p38 = por %p36, %p37
      %p39 = scmp.ne.s32.totalorder %s28, %s29
      %p40 = scmp.eq.s32.totalorder %s20, 0
      %p41 = por %p39, %p40
      %p42 = scmp.ne.s32.totalorder %s28, %s29
      %p43 = scmp.eq.s32.totalorder %s21, 1
      %p44 = por %p42, %p43
      %p46 = scmp.ne.s32.totalorder %s29, %s45
      %p47 = scmp.eq.s32.totalorder %s21, 0
      %p48 = por %p46, %p47
      %s50 = sadd.s32 %s49, 1
      %p53 = scmp.eq.s32.totalorder %s15, 1
      %p54 = scmp.ne.s32.totalorder %s49, %s51
      %p55 = scmp.eq.s32.totalorder %s15, 0
      %p56 = por %p54, %p55
      %p57 = scmp.ne.s32.totalorder %s49, %s51
      %p58 = scmp.eq.s32.totalorder %s20, 1
      %p59 = por %p57, %p58
      %p60 = scmp.ne.s32.totalorder %s51, %s52
      %p61 = scmp.eq.s32.totalorder %s20, 0
      %p62 = por %p60, %p61
      %p63 = scmp.ne.s32.totalorder %s51, %s52
      %p64 = scmp.eq.s32.totalorder %s21, 1
      %p65 = por %p63, %p64
      %p67 = scmp.ne.s32.totalorder %s52, %s66
      %p68 = scmp.eq.s32.totalorder %s21, 0
      %p69 = por %p67, %p68
      %s70 = ssub.s32 %s15, %s22
      %p71 = scmp.eq.s32.totalorder %s70, 0
      %s73 = sadd.s32 %s72, 1
      %s74 = scalar_select %p71, %s72, %s73
      %p77 = pneg %p71
      %p78 = scmp.eq.s32.totalorder %s15, 1
      %p79 = por %p77, %p78
      %p80 = scmp.ne.s32.totalorder %s72, %s75
      %p81 = scmp.eq.s32.totalorder %s15, 0
      %p82 = por %p80, %p81
      %p83 = scmp.ne.s32.totalorder %s72, %s75
      %p84 = scmp.eq.s32.totalorder %s20, 1
      %p85 = por %p83, %p84
      %p86 = scmp.ne.s32.totalorder %s75, %s76
      %p87 = scmp.eq.s32.totalorder %s20, 0
      %p88 = por %p86, %p87
      %p89 = scmp.ne.s32.totalorder %s75, %s76
      %p90 = scmp.eq.s32.totalorder %s21, 1
      %p91 = por %p89, %p90
      %p93 = scmp.ne.s32.totalorder %s76, %s92
      %p94 = scmp.eq.s32.totalorder %s21, 0
      %p95 = por %p93, %p94
      %p96 = scmp.le.s32.totalorder 1, %s15
      %p97 = scmp.lt.s32.totalorder %s15, 3
      %p98 = pnand %p96, %p97
      %p99 = pneg %p98
      // Predicated region
      $region9: #{tpu_custom_call.1} parent=5 // pred_check
        _
      $region10: #{tpu_custom_call.1} parent=5 // pred_check_branch
        %101 = sbr.rel (%p98) target = $region12
      $region11: #{tpu_custom_call.1} parent=5 // pred_region
        %s102 = ssub.s32 %s15, 1
        // Predicated region
        $region13: #{tpu_custom_call.1} parent=11 // pred_check
          %p103 = pneg %p62
        $region14: #{tpu_custom_call.1} parent=11 // pred_check_branch
          %105 = sbr.rel (%p103) target = $region16
        $region15: #{tpu_custom_call.1} parent=11 // pred_region
          %s107 = ssub.s32 2048, 2048
          %108 = vsyncadd [#allocation6], %s107
          %s109 = sshll.u32 [#allocation5], 4
          %s110 = int_to_ptr.vmem [resolvable:$true] %s109
          %115 = dma.hbm_to_vmem [thread:$0]  %s1, 2048, %s110, [#allocation6], 128, 128, 8
        $region16: #{tpu_custom_call.1} parent=11 // pred_fallthru
          _
      $region12: #{tpu_custom_call.1} parent=5 // pred_fallthru
        _
      %p116 = scmp.lt.s32.totalorder %s15, 2
      // Predicated region
      $region17: #{tpu_custom_call.1} parent=5 // pred_check
        %p117 = pneg %p116
      $region18: #{tpu_custom_call.1} parent=5 // pred_check_branch
        %119 = sbr.rel (%p117) target = $region20
      $region19: #{tpu_custom_call.1} parent=5 // pred_region
        // Predicated region
        $region21: #{tpu_custom_call.1} parent=19 // pred_check
          %p120 = pneg %p35
        $region22: #{tpu_custom_call.1} parent=19 // pred_check_branch
          %122 = sbr.rel (%p120) target = $region24
        $region23: #{tpu_custom_call.1} parent=19 // pred_region
          %s123 = sand.u32 %s25, 1
          %s124 = scalar_lea.sflag [#allocation3], %s123
          %s125 = sand.u32 %s25, 1
          %s126 = smul.addr %s125, 320
          %s127 = scalar_lea.vmem [#allocation2], %s126
          %s128 = smul.u32 40, %s15
          %s129 = ssub.s32 79, %s128
          %p130 = scmp.lt.s32.totalorder %s129, 40
          %s131 = scalar_select %p130, %s129, 40
          %s132 = smul.u32 128, %s131
          %s134 = ssub.s32 5120, %s132
          %135 = vsyncadd %s124, %s134
          %p136 = scmp.ne.s32.totalorder 0, %s132
          %s137 = smul.addr %s128, 128
          %s138 = scalar_lea.hbm %s0, %s137
          %s139 = smul.u32 8, %s131
          %s140 = sshll.u32 %s127, 4
          %s141 = int_to_ptr.vmem [resolvable:$true] %s140
          %s142 = sshll.u32 %s139, 4
          %146 = dma.hbm_to_vmem [thread:$0]  (%p136), %s138, %s142, %s141, %s124, 128, 128, 8
        $region24: #{tpu_custom_call.1} parent=19 // pred_fallthru
          _
      $region20: #{tpu_custom_call.1} parent=5 // pred_fallthru
        _
      %p147 = scmp.le.s32.totalorder 1, %s15
      %p148 = scmp.lt.s32.totalorder %s15, 3
      %p149 = pnand %p147, %p148
      %p150 = pneg %p149
      // Predicated region
      $region25: #{tpu_custom_call.1} parent=5 // pred_check
        _
      $region26: #{tpu_custom_call.1} parent=5 // pred_check_branch
        %152 = sbr.rel (%p149) target = $region28
      $region27: #{tpu_custom_call.1} parent=5 // pred_region
        %s153 = ssub.s32 %s15, 1
        %s154 = sand.u32 %s28, 1
        %s155 = scalar_lea.sflag [#allocation3], %s154
        %s156 = sand.u32 %s28, 1
        %s157 = smul.addr %s156, 320
        %s158 = scalar_lea.vmem [#allocation2], %s157
        // Predicated region
        $region29: #{tpu_custom_call.1} parent=27 // pred_check
          %p159 = pneg %p41
        $region30: #{tpu_custom_call.1} parent=27 // pred_check_branch
          %161 = sbr.rel (%p159) target = $region32
        $region31: #{tpu_custom_call.1} parent=27 // pred_region
          %162 = dma.done %s155, 5120
        $region32: #{tpu_custom_call.1} parent=27 // pred_fallthru
          _
        // Predicated region
        $region33: #{tpu_custom_call.1} parent=27 // pred_check
          %p163 = pneg %p62
        $region34: #{tpu_custom_call.1} parent=27 // pred_check_branch
          %165 = sbr.rel (%p163) target = $region36
        $region35: #{tpu_custom_call.1} parent=27 // pred_region
          %166 = dma.done [#allocation6], 2048
        $region36: #{tpu_custom_call.1} parent=27 // pred_fallthru
          _
        %s167 = sand.u32 %s28, 1
        %s168 = scalar_lea.sflag [#allocation3], %s167
        %s169 = sand.u32 %s28, 1
        %s170 = smul.addr %s169, 320
        %s171 = scalar_lea.vmem [#allocation2], %s170
        %p172 = pneg %p41
        %p173 = pneg %p38
        %p174 = pneg %p62
        %p175 = pneg %p59
        %p176 = pneg %p88
        %p177 = pneg %p85
        %s178 = sand.u32 %s75, 1
        %s179 = scalar_lea.sflag [#allocation4], %s178
        %s180 = sand.u32 %s75, 1
        %s181 = smul.addr %s180, 320
        %s182 = scalar_lea.vmem [#allocation7], %s181
        %s183 = smul.u32 40, %s20
        %s184 = ssub.s32 79, %s183
        %p185 = scmp.lt.s32.totalorder %s184, 40
        %s186 = scalar_select %p185, %s184, 40
        %s187 = smul.u32 128, %s186
        %s188 = smul.u32 40, %s20
        %s189 = ssub.s32 79, %s188
        %p190 = scmp.lt.s32.totalorder %s189, 40
        %s191 = scalar_select %p190, %s189, 40
        %s192 = smul.u32 128, %s191
        %v193 = vld [vmem:[%s158] sm:$0xff]
        %v194 = vld [vmem:[%s158 + $0x8] sm:$0xff]
        %v195 = vld [vmem:[%s158 + $0x10] sm:$0xff]
        %v196 = vld [vmem:[%s158 + $0x18] sm:$0xff]
        %v197 = vld [vmem:[%s158 + $0x20] sm:$0xff]
        %v198 = vld [vmem:[%s158 + $0x28] sm:$0xff]
        %v199 = vld [vmem:[%s158 + $0x30] sm:$0xff]
        %v200 = vld [vmem:[%s158 + $0x38] sm:$0xff]
        %v201 = vld [vmem:[%s158 + $0x40] sm:$0xff]
        %v202 = vld [vmem:[%s158 + $0x48] sm:$0xff]
        %v203 = vld [vmem:[%s158 + $0x50] sm:$0xff]
        %v204 = vld [vmem:[%s158 + $0x58] sm:$0xff]
        %v205 = vld [vmem:[%s158 + $0x60] sm:$0xff]
        %v206 = vld [vmem:[%s158 + $0x68] sm:$0xff]
        %v207 = vld [vmem:[%s158 + $0x70] sm:$0xff]
        %v208 = vld [vmem:[%s158 + $0x78] sm:$0xff]
        %v209 = vld [vmem:[%s158 + $0x80] sm:$0xff]
        %v210 = vld [vmem:[%s158 + $0x88] sm:$0xff]
        %v211 = vld [vmem:[%s158 + $0x90] sm:$0xff]
        %v212 = vld [vmem:[%s158 + $0x98] sm:$0xff]
        %v213 = vld [vmem:[%s158 + $0xa0] sm:$0xff]
        %v214 = vld [vmem:[%s158 + $0xa8] sm:$0xff]
        %v215 = vld [vmem:[%s158 + $0xb0] sm:$0xff]
        %v216 = vld [vmem:[%s158 + $0xb8] sm:$0xff]
        %v217 = vld [vmem:[%s158 + $0xc0] sm:$0xff]
        %v218 = vld [vmem:[%s158 + $0xc8] sm:$0xff]
        %v219 = vld [vmem:[%s158 + $0xd0] sm:$0xff]
        %v220 = vld [vmem:[%s158 + $0xd8] sm:$0xff]
        %v221 = vld [vmem:[%s158 + $0xe0] sm:$0xff]
        %v222 = vld [vmem:[%s158 + $0xe8] sm:$0xff]
        %v223 = vld [vmem:[%s158 + $0xf0] sm:$0xff]
        %v224 = vld [vmem:[%s158 + $0xf8] sm:$0xff]
        %v225 = vld [vmem:[%s158 + $0x100] sm:$0xff]
        %v226 = vld [vmem:[%s158 + $0x108] sm:$0xff]
        %v227 = vld [vmem:[%s158 + $0x110] sm:$0xff]
        %v228 = vld [vmem:[%s158 + $0x118] sm:$0xff]
        %v229 = vld [vmem:[%s158 + $0x120] sm:$0xff]
        %v230 = vld [vmem:[%s158 + $0x128] sm:$0xff]
        %v231 = vld [vmem:[%s158 + $0x130] sm:$0xff]
        %v232 = vld [vmem:[%s158 + $0x138] sm:$0xff]
        %v233 = vld [vmem:[#allocation5] sm:$0xff]
        %v234 = vld [vmem:[#allocation5 + $0x8] sm:$0xff]
        %v235 = vld [vmem:[#allocation5 + $0x10] sm:$0xff]
        %v236 = vld [vmem:[#allocation5 + $0x18] sm:$0xff]
        %v237 = vld [vmem:[#allocation5 + $0x20] sm:$0xff]
        %v238 = vld [vmem:[#allocation5 + $0x28] sm:$0xff]
        %v239 = vld [vmem:[#allocation5 + $0x30] sm:$0xff]
        %v240 = vld [vmem:[#allocation5 + $0x38] sm:$0xff]
        %v241 = vld [vmem:[#allocation5 + $0x40] sm:$0xff]
        %v242 = vld [vmem:[#allocation5 + $0x48] sm:$0xff]
        %v243 = vld [vmem:[#allocation5 + $0x50] sm:$0xff]
        %v244 = vld [vmem:[#allocation5 + $0x58] sm:$0xff]
        %v245 = vld [vmem:[#allocation5 + $0x60] sm:$0xff]
        %v246 = vld [vmem:[#allocation5 + $0x68] sm:$0xff]
        %v247 = vld [vmem:[#allocation5 + $0x70] sm:$0xff]
        %v248 = vld [vmem:[#allocation5 + $0x78] sm:$0xff]
        %249 = vmatprep.subr.mxu0 0.0
        %250 = vmatpush1.msra.mxu0 %v233
        %251 = vmatprep.subr.mxu0 0.0
        %252 = vmatpush1.msra.mxu0 %v234
        %253 = vmatprep.subr.mxu0 0.0
        %254 = vmatpush1.msra.mxu0 %v235
        %255 = vmatprep.subr.mxu0 0.0
        %256 = vmatpush1.msra.mxu0 %v236
        %257 = vmatprep.subr.mxu0 0.0
        %258 = vmatpush1.msra.mxu0 %v237
        %259 = vmatprep.subr.mxu0 0.0
        %260 = vmatpush1.msra.mxu0 %v238
        %261 = vmatprep.subr.mxu0 0.0
        %262 = vmatpush1.msra.mxu0 %v239
        %263 = vmatprep.subr.mxu0 0.0
        %264 = vmatpush1.msra.mxu0 %v240
        %265 = vmatprep.subr.mxu0 0.0
        %266 = vmatpush1.msra.mxu0 %v241
        %267 = vmatprep.subr.mxu0 0.0
        %268 = vmatpush1.msra.mxu0 %v242
        %269 = vmatprep.subr.mxu0 0.0
        %270 = vmatpush1.msra.mxu0 %v243
        %271 = vmatprep.subr.mxu0 0.0
        %272 = vmatpush1.msra.mxu0 %v244
        %273 = vmatprep.subr.mxu0 0.0
        %274 = vmatpush1.msra.mxu0 %v245
        %275 = vmatprep.subr.mxu0 0.0
        %276 = vmatpush1.msra.mxu0 %v246
        %277 = vmatprep.subr.mxu0 0.0
        %278 = vmatpush1.msra.mxu0 %v247
        %279 = vmatprep.subr.mxu0 0.0
        %280 = vmatpush1.msra.mxu0 %v248
        %281 = vmatprep.subr.mxu0 0.0
        %282 = vmatpush1.msra.mxu0 0.0
        %283 = vmatprep.subr.mxu0 0.0
        %284 = vmatpush1.msra.mxu0 0.0
        %285 = vmatprep.subr.mxu0 0.0
        %286 = vmatpush1.msra.mxu0 0.0
        %287 = vmatprep.subr.mxu0 0.0
        %288 = vmatpush1.msra.mxu0 0.0
        %289 = vmatprep.subr.mxu0 0.0
        %290 = vmatpush1.msra.mxu0 0.0
        %291 = vmatprep.subr.mxu0 0.0
        %292 = vmatpush1.msra.mxu0 0.0
        %293 = vmatprep.subr.mxu0 0.0
        %294 = vmatpush1.msra.mxu0 0.0
        %295 = vmatprep.subr.mxu0 0.0
        %296 = vmatpush1.msra.mxu0 0.0
        %297 = vmatprep.subr.mxu0 0.0
        %298 = vmatpush1.msra.mxu0 0.0
        %299 = vmatprep.subr.mxu0 0.0
        %300 = vmatpush1.msra.mxu0 0.0
        %301 = vmatprep.subr.mxu0 0.0
        %302 = vmatpush1.msra.mxu0 0.0
        %303 = vmatprep.subr.mxu0 0.0
        %304 = vmatpush1.msra.mxu0 0.0
        %305 = vmatprep.subr.mxu0 0.0
        %306 = vmatpush1.msra.mxu0 0.0
        %307 = vmatprep.subr.mxu0 0.0
        %308 = vmatpush1.msra.mxu0 0.0
        %309 = vmatprep.subr.mxu0 0.0
        %310 = vmatpush1.msra.mxu0 0.0
        %311 = vmatprep.subr.mxu0 0.0
        %312 = vmatpush1.msra.mxu0 0.0
        %313 = vmatprep.mubr.f32.mxu0 0.0
        %314 = vmatmul.mubr.f32.gmra.mrb[0].mxu0 %v193
        %v315 = vpop.f32.mrb[0].mxu0
        %v316 = vadd.f32 0.0, %v315
        %v317 = vpop.f32.mrb[0].mxu0
        %318 = vmatprep.mubr.f32.mxu0 0.0
        %319 = vmatmul.mubr.f32.gmra.mrb[0].mxu0 %v194
        %v320 = vpop.f32.mrb[0].mxu0
        %v321 = vadd.f32 0.0, %v320
        %v322 = vpop.f32.mrb[0].mxu0
        %323 = vmatprep.mubr.f32.mxu0 0.0
        %324 = vmatmul.mubr.f32.gmra.mrb[0].mxu0 %v195
        %v325 = vpop.f32.mrb[0].mxu0
        %v326 = vadd.f32 0.0, %v325
        %v327 = vpop.f32.mrb[0].mxu0
        %328 = vmatprep.mubr.f32.mxu0 0.0
        %329 = vmatmul.mubr.f32.gmra.mrb[0].mxu0 %v196
        %v330 = vpop.f32.mrb[0].mxu0
        %v331 = vadd.f32 0.0, %v330
        %v332 = vpop.f32.mrb[0].mxu0
        %333 = vmatprep.mubr.f32.mxu0 0.0
        %334 = vmatmul.mubr.f32.gmra.mrb[0].mxu0 %v197
        %v335 = vpop.f32.mrb[0].mxu0
        %v336 = vadd.f32 0.0, %v335
        %v337 = vpop.f32.mrb[0].mxu0
        %338 = vmatprep.mubr.f32.mxu0 0.0
        %339 = vmatmul.mubr.f32.gmra.mrb[0].mxu0 %v198
        %v340 = vpop.f32.mrb[0].mxu0
        %v341 = vadd.f32 0.0, %v340
        %v342 = vpop.f32.mrb[0].mxu0
        %343 = vmatprep.mubr.f32.mxu0 0.0
        %344 = vmatmul.mubr.f32.gmra.mrb[0].mxu0 %v199
        %v345 = vpop.f32.mrb[0].mxu0
        %v346 = vadd.f32 0.0, %v345
        %v347 = vpop.f32.mrb[0].mxu0
        %348 = vmatprep.mubr.f32.mxu0 0.0
        %349 = vmatmul.mubr.f32.gmra.mrb[0].mxu0 %v200
        %v350 = vpop.f32.mrb[0].mxu0
        %v351 = vadd.f32 0.0, %v350
        %v352 = vpop.f32.mrb[0].mxu0
        %353 = vmatprep.mubr.f32.mxu0 0.0
        %354 = vmatmul.mubr.f32.gmra.mrb[0].mxu0 %v201
        %v355 = vpop.f32.mrb[0].mxu0
        %v356 = vadd.f32 0.0, %v355
        %v357 = vpop.f32.mrb[0].mxu0
        %358 = vmatprep.mubr.f32.mxu0 0.0
        %359 = vmatmul.mubr.f32.gmra.mrb[0].mxu0 %v202
        %v360 = vpop.f32.mrb[0].mxu0
        %v361 = vadd.f32 0.0, %v360
        %v362 = vpop.f32.mrb[0].mxu0
        %363 = vmatprep.mubr.f32.mxu0 0.0
        %364 = vmatmul.mubr.f32.gmra.mrb[0].mxu0 %v203
        %v365 = vpop.f32.mrb[0].mxu0
        %v366 = vadd.f32 0.0, %v365
        %v367 = vpop.f32.mrb[0].mxu0
        %368 = vmatprep.mubr.f32.mxu0 0.0
        %369 = vmatmul.mubr.f32.gmra.mrb[0].mxu0 %v204
        %v370 = vpop.f32.mrb[0].mxu0
        %v371 = vadd.f32 0.0, %v370
        %v372 = vpop.f32.mrb[0].mxu0
        %373 = vmatprep.mubr.f32.mxu0 0.0
        %374 = vmatmul.mubr.f32.gmra.mrb[0].mxu0 %v205
        %v375 = vpop.f32.mrb[0].mxu0
        %v376 = vadd.f32 0.0, %v375
        %v377 = vpop.f32.mrb[0].mxu0
        %378 = vmatprep.mubr.f32.mxu0 0.0
        %379 = vmatmul.mubr.f32.gmra.mrb[0].mxu0 %v206
        %v380 = vpop.f32.mrb[0].mxu0
        %v381 = vadd.f32 0.0, %v380
        %v382 = vpop.f32.mrb[0].mxu0
        %383 = vmatprep.mubr.f32.mxu0 0.0
        %384 = vmatmul.mubr.f32.gmra.mrb[0].mxu0 %v207
        %v385 = vpop.f32.mrb[0].mxu0
        %v386 = vadd.f32 0.0, %v385
        %v387 = vpop.f32.mrb[0].mxu0
        %388 = vmatprep.mubr.f32.mxu0 0.0
        %389 = vmatmul.mubr.f32.gmra.mrb[0].mxu0 %v208
        %v390 = vpop.f32.mrb[0].mxu0
        %v391 = vadd.f32 0.0, %v390
        %v392 = vpop.f32.mrb[0].mxu0
        %393 = vmatprep.mubr.f32.mxu0 0.0
        %394 = vmatmul.mubr.f32.gmra.mrb[0].mxu0 %v209
        %v395 = vpop.f32.mrb[0].mxu0
        %v396 = vadd.f32 0.0, %v395
        %v397 = vpop.f32.mrb[0].mxu0
        %398 = vmatprep.mubr.f32.mxu0 0.0
        %399 = vmatmul.mubr.f32.gmra.mrb[0].mxu0 %v210
        %v400 = vpop.f32.mrb[0].mxu0
        %v401 = vadd.f32 0.0, %v400
        %v402 = vpop.f32.mrb[0].mxu0
        %403 = vmatprep.mubr.f32.mxu0 0.0
        %404 = vmatmul.mubr.f32.gmra.mrb[0].mxu0 %v211
        %v405 = vpop.f32.mrb[0].mxu0
        %v406 = vadd.f32 0.0, %v405
        %v407 = vpop.f32.mrb[0].mxu0
        %408 = vmatprep.mubr.f32.mxu0 0.0
        %409 = vmatmul.mubr.f32.gmra.mrb[0].mxu0 %v212
        %v410 = vpop.f32.mrb[0].mxu0
        %v411 = vadd.f32 0.0, %v410
        %v412 = vpop.f32.mrb[0].mxu0
        %413 = vmatprep.mubr.f32.mxu0 0.0
        %414 = vmatmul.mubr.f32.gmra.mrb[0].mxu0 %v213
        %v415 = vpop.f32.mrb[0].mxu0
        %v416 = vadd.f32 0.0, %v415
        %v417 = vpop.f32.mrb[0].mxu0
        %418 = vmatprep.mubr.f32.mxu0 0.0
        %419 = vmatmul.mubr.f32.gmra.mrb[0].mxu0 %v214
        %v420 = vpop.f32.mrb[0].mxu0
        %v421 = vadd.f32 0.0, %v420
        %v422 = vpop.f32.mrb[0].mxu0
        %423 = vmatprep.mubr.f32.mxu0 0.0
        %424 = vmatmul.mubr.f32.gmra.mrb[0].mxu0 %v215
        %v425 = vpop.f32.mrb[0].mxu0
        %v426 = vadd.f32 0.0, %v425
        %v427 = vpop.f32.mrb[0].mxu0
        %428 = vmatprep.mubr.f32.mxu0 0.0
        %429 = vmatmul.mubr.f32.gmra.mrb[0].mxu0 %v216
        %v430 = vpop.f32.mrb[0].mxu0
        %v431 = vadd.f32 0.0, %v430
        %v432 = vpop.f32.mrb[0].mxu0
        %433 = vmatprep.mubr.f32.mxu0 0.0
        %434 = vmatmul.mubr.f32.gmra.mrb[0].mxu0 %v217
        %v435 = vpop.f32.mrb[0].mxu0
        %v436 = vadd.f32 0.0, %v435
        %v437 = vpop.f32.mrb[0].mxu0
        %438 = vmatprep.mubr.f32.mxu0 0.0
        %439 = vmatmul.mubr.f32.gmra.mrb[0].mxu0 %v218
        %v440 = vpop.f32.mrb[0].mxu0
        %v441 = vadd.f32 0.0, %v440
        %v442 = vpop.f32.mrb[0].mxu0
        %443 = vmatprep.mubr.f32.mxu0 0.0
        %444 = vmatmul.mubr.f32.gmra.mrb[0].mxu0 %v219
        %v445 = vpop.f32.mrb[0].mxu0
        %v446 = vadd.f32 0.0, %v445
        %v447 = vpop.f32.mrb[0].mxu0
        %448 = vmatprep.mubr.f32.mxu0 0.0
        %449 = vmatmul.mubr.f32.gmra.mrb[0].mxu0 %v220
        %v450 = vpop.f32.mrb[0].mxu0
        %v451 = vadd.f32 0.0, %v450
        %v452 = vpop.f32.mrb[0].mxu0
        %453 = vmatprep.mubr.f32.mxu0 0.0
        %454 = vmatmul.mubr.f32.gmra.mrb[0].mxu0 %v221
        %v455 = vpop.f32.mrb[0].mxu0
        %v456 = vadd.f32 0.0, %v455
        %v457 = vpop.f32.mrb[0].mxu0
        %458 = vmatprep.mubr.f32.mxu0 0.0
        %459 = vmatmul.mubr.f32.gmra.mrb[0].mxu0 %v222
        %v460 = vpop.f32.mrb[0].mxu0
        %v461 = vadd.f32 0.0, %v460
        %v462 = vpop.f32.mrb[0].mxu0
        %463 = vmatprep.mubr.f32.mxu0 0.0
        %464 = vmatmul.mubr.f32.gmra.mrb[0].mxu0 %v223
        %v465 = vpop.f32.mrb[0].mxu0
        %v466 = vadd.f32 0.0, %v465
        %v467 = vpop.f32.mrb[0].mxu0
        %468 = vmatprep.mubr.f32.mxu0 0.0
        %469 = vmatmul.mubr.f32.gmra.mrb[0].mxu0 %v224
        %v470 = vpop.f32.mrb[0].mxu0
        %v471 = vadd.f32 0.0, %v470
        %v472 = vpop.f32.mrb[0].mxu0
        %473 = vmatprep.mubr.f32.mxu0 0.0
        %474 = vmatmul.mubr.f32.gmra.mrb[0].mxu0 %v225
        %v475 = vpop.f32.mrb[0].mxu0
        %v476 = vadd.f32 0.0, %v475
        %v477 = vpop.f32.mrb[0].mxu0
        %478 = vmatprep.mubr.f32.mxu0 0.0
        %479 = vmatmul.mubr.f32.gmra.mrb[0].mxu0 %v226
        %v480 = vpop.f32.mrb[0].mxu0
        %v481 = vadd.f32 0.0, %v480
        %v482 = vpop.f32.mrb[0].mxu0
        %483 = vmatprep.mubr.f32.mxu0 0.0
        %484 = vmatmul.mubr.f32.gmra.mrb[0].mxu0 %v227
        %v485 = vpop.f32.mrb[0].mxu0
        %v486 = vadd.f32 0.0, %v485
        %v487 = vpop.f32.mrb[0].mxu0
        %488 = vmatprep.mubr.f32.mxu0 0.0
        %489 = vmatmul.mubr.f32.gmra.mrb[0].mxu0 %v228
        %v490 = vpop.f32.mrb[0].mxu0
        %v491 = vadd.f32 0.0, %v490
        %v492 = vpop.f32.mrb[0].mxu0
        %493 = vmatprep.mubr.f32.mxu0 0.0
        %494 = vmatmul.mubr.f32.gmra.mrb[0].mxu0 %v229
        %v495 = vpop.f32.mrb[0].mxu0
        %v496 = vadd.f32 0.0, %v495
        %v497 = vpop.f32.mrb[0].mxu0
        %498 = vmatprep.mubr.f32.mxu0 0.0
        %499 = vmatmul.mubr.f32.gmra.mrb[0].mxu0 %v230
        %v500 = vpop.f32.mrb[0].mxu0
        %v501 = vadd.f32 0.0, %v500
        %v502 = vpop.f32.mrb[0].mxu0
        %503 = vmatprep.mubr.f32.mxu0 0.0
        %504 = vmatmul.mubr.f32.gmra.mrb[0].mxu0 %v231
        %v505 = vpop.f32.mrb[0].mxu0
        %v506 = vadd.f32 0.0, %v505
        %v507 = vpop.f32.mrb[0].mxu0
        %508 = vmatprep.mubr.f32.mxu0 0.0
        %509 = vmatmul.mubr.f32.gmra.mrb[0].mxu0 %v232
        %v510 = vpop.f32.mrb[0].mxu0
        %v511 = vadd.f32 0.0, %v510
        %v512 = vpop.f32.mrb[0].mxu0
        %513 = vdwg.mxu0
        %514 = vst [vmem:[%s182] sm:$0xff] %v316
        %515 = vst [vmem:[%s182 + $0x8] sm:$0xff] %v321
        %516 = vst [vmem:[%s182 + $0x10] sm:$0xff] %v326
        %517 = vst [vmem:[%s182 + $0x18] sm:$0xff] %v331
        %518 = vst [vmem:[%s182 + $0x20] sm:$0xff] %v336
        %519 = vst [vmem:[%s182 + $0x28] sm:$0xff] %v341
        %520 = vst [vmem:[%s182 + $0x30] sm:$0xff] %v346
        %521 = vst [vmem:[%s182 + $0x38] sm:$0xff] %v351
        %522 = vst [vmem:[%s182 + $0x40] sm:$0xff] %v356
        %523 = vst [vmem:[%s182 + $0x48] sm:$0xff] %v361
        %524 = vst [vmem:[%s182 + $0x50] sm:$0xff] %v366
        %525 = vst [vmem:[%s182 + $0x58] sm:$0xff] %v371
        %526 = vst [vmem:[%s182 + $0x60] sm:$0xff] %v376
        %527 = vst [vmem:[%s182 + $0x68] sm:$0xff] %v381
        %528 = vst [vmem:[%s182 + $0x70] sm:$0xff] %v386
        %529 = vst [vmem:[%s182 + $0x78] sm:$0xff] %v391
        %530 = vst [vmem:[%s182 + $0x80] sm:$0xff] %v396
        %531 = vst [vmem:[%s182 + $0x88] sm:$0xff] %v401
        %532 = vst [vmem:[%s182 + $0x90] sm:$0xff] %v406
        %533 = vst [vmem:[%s182 + $0x98] sm:$0xff] %v411
        %534 = vst [vmem:[%s182 + $0xa0] sm:$0xff] %v416
        %535 = vst [vmem:[%s182 + $0xa8] sm:$0xff] %v421
        %536 = vst [vmem:[%s182 + $0xb0] sm:$0xff] %v426
        %537 = vst [vmem:[%s182 + $0xb8] sm:$0xff] %v431
        %538 = vst [vmem:[%s182 + $0xc0] sm:$0xff] %v436
        %539 = vst [vmem:[%s182 + $0xc8] sm:$0xff] %v441
        %540 = vst [vmem:[%s182 + $0xd0] sm:$0xff] %v446
        %541 = vst [vmem:[%s182 + $0xd8] sm:$0xff] %v451
        %542 = vst [vmem:[%s182 + $0xe0] sm:$0xff] %v456
        %543 = vst [vmem:[%s182 + $0xe8] sm:$0xff] %v461
        %544 = vst [vmem:[%s182 + $0xf0] sm:$0xff] %v466
        %545 = vst [vmem:[%s182 + $0xf8] sm:$0xff] %v471
        %546 = vst [vmem:[%s182 + $0x100] sm:$0xff] %v476
        %547 = vst [vmem:[%s182 + $0x108] sm:$0xff] %v481
        %548 = vst [vmem:[%s182 + $0x110] sm:$0xff] %v486
        %549 = vst [vmem:[%s182 + $0x118] sm:$0xff] %v491
        %550 = vst [vmem:[%s182 + $0x120] sm:$0xff] %v496
        %551 = vst [vmem:[%s182 + $0x128] sm:$0xff] %v501
        %552 = vst [vmem:[%s182 + $0x130] sm:$0xff] %v506
        %553 = vst [vmem:[%s182 + $0x138] sm:$0xff] %v511
        %s554 = sand.u32 %s75, 1
        %s555 = scalar_lea.sflag [#allocation4], %s554
        %s556 = sand.u32 %s75, 1
        %s557 = smul.addr %s556, 320
        %s558 = scalar_lea.vmem [#allocation7], %s557
        // Predicated region
        $region37: #{tpu_custom_call.1} parent=27 // pred_check
          %p559 = pneg %p85
        $region38: #{tpu_custom_call.1} parent=27 // pred_check_branch
          %561 = sbr.rel (%p559) target = $region40
        $region39: #{tpu_custom_call.1} parent=27 // pred_region
          %s562 = smul.u32 40, %s20
          %s563 = ssub.s32 79, %s562
          %p564 = scmp.lt.s32.totalorder %s563, 40
          %s565 = scalar_select %p564, %s563, 40
          %s566 = smul.u32 128, %s565
          %s568 = ssub.s32 5120, %s566
          %569 = vsyncadd %s555, %s568
          %p570 = scmp.ne.s32.totalorder 0, %s566
          %s571 = smul.addr %s562, 128
          %s572 = scalar_lea.hbm %s2, %s571
          %s573 = smul.u32 8, %s565
          %s574 = sshll.u32 %s558, 4
          %s575 = int_to_ptr.vmem [resolvable:$true] %s574
          %s576 = sshll.u32 %s573, 4
          %580 = dma.vmem_to_hbm [thread:$0]  (%p570), %s575, %s576, %s572, %s555, 128, 128, 8
        $region40: #{tpu_custom_call.1} parent=27 // pred_fallthru
          _
      $region28: #{tpu_custom_call.1} parent=5 // pred_fallthru
        _
      %p581 = scmp.le.s32.totalorder 2, %s15
      // Predicated region
      $region41: #{tpu_custom_call.1} parent=5 // pred_check
        %p582 = pneg %p581
      $region42: #{tpu_custom_call.1} parent=5 // pred_check_branch
        %584 = sbr.rel (%p582) target = $region44
      $region43: #{tpu_custom_call.1} parent=5 // pred_region
        %s585 = ssub.s32 %s15, 2
        // Predicated region
        $region45: #{tpu_custom_call.1} parent=43 // pred_check
          %p586 = pneg %p91
        $region46: #{tpu_custom_call.1} parent=43 // pred_check_branch
          %588 = sbr.rel (%p586) target = $region48
        $region47: #{tpu_custom_call.1} parent=43 // pred_region
          %s589 = sand.u32 %s76, 1
          %s590 = scalar_lea.sflag [#allocation4], %s589
          %s591 = sand.u32 %s76, 1
          %s592 = smul.addr %s591, 320
          %s593 = scalar_lea.vmem [#allocation7], %s592
          %594 = dma.done %s590, 5120
        $region48: #{tpu_custom_call.1} parent=43 // pred_fallthru
          _
      $region44: #{tpu_custom_call.1} parent=5 // pred_fallthru
        _
    $region6: #{tpu_custom_call.1} parent=1 // loop_footer
      %s19 = sadd.s32 1, %s15
    $region7: #{tpu_custom_call.1} parent=1 // loop_footer_branch
      %14 = sbr.rel target = $region3
    $region8: #{tpu_custom_call.1} parent=1 // loop_exit
      _
    %595 = vsyncpa [#allocation3], 1
    %s596 = scalar_lea.sflag [#allocation3], 1
    %597 = vsyncpa %s596, 1
    %598 = vsyncpa [#allocation6], 1
    %599 = vsyncpa [#allocation4], 1
    %s600 = scalar_lea.sflag [#allocation4], 1
    %601 = vsyncpa %s600, 1

</llo_original>
